<compile_context>
chip_gen: v7x
topology: tpu7x:2x2x1
jax: 0.10.0
libtpu: 0.0.40
codegen_flags: <defaults>
</compile_context>

<pallas_src>
import jax
import jax.numpy as jnp
from jax.experimental import pallas as pl
from jax.experimental.pallas import tpu as pltpu


def _kernel_body(pred_ref, gt_ref, w_ref, out_ref, acc_ref):
    """Shared body; w_ref is None when use_target_weight is False."""
    col = pl.program_id(1)

    @pl.when(col == 0)
    def _():
        acc_ref[...] = jnp.zeros_like(acc_ref)

    diff = pred_ref[...].astype(jnp.float32) - gt_ref[...].astype(jnp.float32)
    if w_ref is not None:
        diff = diff * w_ref[...].astype(jnp.float32)  # (TR, 1) broadcasts over TC
    acc_ref[...] += diff * diff

    @pl.when(col == pl.num_programs(1) - 1)
    def _():
        total = jnp.sum(acc_ref[...])
        # Lane-dense, unmasked store of the per-row-tile partial sum;
        # the wrapper reads element [i, 0, 0].
        out_ref[...] = jnp.full(out_ref.shape, total, dtype=jnp.float32)


def _make_kernel(use_weight):
    if use_weight:
        def kernel(pred_ref, gt_ref, w_ref, out_ref, acc_ref):
            _kernel_body(pred_ref, gt_ref, w_ref, out_ref, acc_ref)
    else:
        def kernel(pred_ref, gt_ref, out_ref, acc_ref):
            _kernel_body(pred_ref, gt_ref, None, out_ref, acc_ref)
    return kernel


def _pick_tile(dim, unit, max_tile):
    """Largest tile <= max_tile that divides dim and is a multiple of unit.

    Falls back to the full dim (always a legal TPU block shape), so the kernel
    is correct for any shape; only very large awkward dims pay extra VMEM."""
    if dim <= max_tile:
        return dim
    best = 0
    for t in range(unit, max_tile + 1, unit):
        if dim % t == 0:
            best = t
    return best if best else dim


def joints_mse_loss(output, target, target_weight, use_target_weight=True):
    """output/target: (B, J, H, W); target_weight: (B, J, 1). Returns scalar f32."""
    B, J, H, W = output.shape
    N = B * J
    HW = H * W

    # Free, contiguous reshapes (no transpose -> no extra HBM traffic).
    pred = output.reshape(N, HW)
    gt = target.reshape(N, HW)

    # Tile sizes: <= 2 MiB f32 per input block; respect (8, 128) tiling rules.
    TR = _pick_tile(N, 8, 256)
    TC = _pick_tile(HW, 128, 2048)
    grid = (N // TR, HW // TC)
    n_row_tiles = grid[0]

    in_specs = [
        pl.BlockSpec((TR, TC), lambda i, j: (i, j)),
        pl.BlockSpec((TR, TC), lambda i, j: (i, j)),
    ]
    args = [pred, gt]
    if use_target_weight:
        w = target_weight.reshape(N, 1)
        in_specs.append(pl.BlockSpec((TR, 1), lambda i, j: (i, 0)))
        args.append(w)

    out = pl.pallas_call(
        _make_kernel(use_target_weight),
        out_shape=jax.ShapeDtypeStruct((n_row_tiles, 8, 128), jnp.float32),
        grid=grid,
        in_specs=in_specs,
        out_specs=pl.BlockSpec((1, 8, 128), lambda i, j: (i, 0, 0)),
        scratch_shapes=[pltpu.VMEM((TR, TC), jnp.float32)],
        compiler_params=pltpu.CompilerParams(
            dimension_semantics=("parallel", "arbitrary"),
        ),
    )(*args)

    # Fold 0.5, the per-joint mean (1/(B*HW)) and the final 1/J into one scale.
    scale = 0.5 / float(B * HW * J)
    partials = out[:, 0, 0]
    return jnp.sum(partials) * jnp.float32(scale)


def joints_mse_loss_ref(output, target, target_weight, use_target_weight=True):
    """Pure-JAX reference mirroring the PyTorch per-joint loop."""
    B, J, H, W = output.shape
    pred = output.reshape(B, J, -1)
    gt = target.reshape(B, J, -1)
    loss = 0.0
    for idx in range(J):
        hp = pred[:, idx, :]
        hg = gt[:, idx, :]
        if use_target_weight:
            w = target_weight[:, idx]  # (B, 1), broadcasts over HW
            hp = hp * w
            hg = hg * w
        loss = loss + 0.5 * jnp.mean((hp - hg) ** 2)
    return loss / J


def _run_case(B, J, H, W, use_target_weight, seed=0):
    key = jax.random.PRNGKey(seed)
    k1, k2, k3 = jax.random.split(key, 3)
    output = jax.random.normal(k1, (B, J, H, W), dtype=jnp.float32)
    target = jax.random.normal(k2, (B, J, H, W), dtype=jnp.float32)
    target_weight = jax.random.uniform(k3, (B, J, 1), dtype=jnp.float32)

    loss = jax.block_until_ready(
        joints_mse_loss(output, target, target_weight, use_target_weight)
    )
    ref = joints_mse_loss_ref(output, target, target_weight, use_target_weight)
    assert jnp.allclose(loss, ref, rtol=1e-5, atol=1e-6), (B, J, H, W, loss, ref)


if __name__ == "__main__":
    # Small base case (single tile), both weight modes.
    _run_case(2, 4, 16, 16, use_target_weight=True)
    _run_case(2, 4, 16, 16, use_target_weight=False)
    # Exercises accumulation across multiple HW (column) tiles (HW=4096 > 2048).
    _run_case(2, 4, 64, 64, use_target_weight=True)

    print("KERNEL_OK")
</pallas_src>

<mosaic_0001>
module attributes {stable_mosaic.version = 11 : i64} {
  func.func @kernel(%arg0: i32, %arg1: i32, %arg2: memref<8x256xf32, #tpu.memory_space<vmem>>, %arg3: memref<8x256xf32, #tpu.memory_space<vmem>>, %arg4: memref<8x1xf32, #tpu.memory_space<vmem>>, %arg5: memref<1x8x128xf32, #tpu.memory_space<vmem>>, %arg6: memref<8x256xf32, #tpu.memory_space<vmem>>) attributes {dimension_semantics = [#tpu.dimension_semantics<parallel>, #tpu.dimension_semantics<arbitrary>], iteration_bounds = array<i64: 1, 1>, scalar_prefetch = 0 : i64, scratch_operands = 1 : i64, tpu.core_type = #tpu.core_type<tc>, window_params = [{transform_indices = @transform_0, window_bounds = array<i64: 8, 256>}, {transform_indices = @transform_1, window_bounds = array<i64: 8, 256>}, {transform_indices = @transform_2, window_bounds = array<i64: 8, 1>}, {transform_indices = @transform_3, window_bounds = array<i64: 1, 8, 128>}]} {
    %c0_i32 = arith.constant 0 : i32
    %0 = arith.cmpi eq, %arg1, %c0_i32 : i32
    %1 = arith.extui %0 : i1 to i32
    %c0_i32_0 = arith.constant 0 : i32
    %2 = arith.cmpi ne, %1, %c0_i32_0 : i32
    scf.if %2 {
      %cst = arith.constant 0.000000e+00 : f32
      %16 = vector.broadcast %cst : f32 to vector<8x256xf32>
      %c0_12 = arith.constant 0 : index
      %c0_13 = arith.constant 0 : index
      %17 = vector.load %arg6[%c0_12, %c0_13] : memref<8x256xf32, #tpu.memory_space<vmem>>, vector<8x256xf32>
      tpu.vector_store %arg6[%c0_12, %c0_13], %16 {strides = array<i32>} : memref<8x256xf32, #tpu.memory_space<vmem>>, vector<8x256xf32>,
    } else {
    }
    %c0 = arith.constant 0 : index
    %c0_1 = arith.constant 0 : index
    %3 = vector.load %arg2[%c0, %c0_1] : memref<8x256xf32, #tpu.memory_space<vmem>>, vector<8x256xf32>
    %c0_2 = arith.constant 0 : index
    %c0_3 = arith.constant 0 : index
    %4 = vector.load %arg3[%c0_2, %c0_3] : memref<8x256xf32, #tpu.memory_space<vmem>>, vector<8x256xf32>
    %5 = arith.subf %3, %4 : vector<8x256xf32>
    %c0_4 = arith.constant 0 : index
    %c0_5 = arith.constant 0 : index
    %6 = vector.load %arg4[%c0_4, %c0_5] : memref<8x1xf32, #tpu.memory_space<vmem>>, vector<8x1xf32>
    %7 = vector.broadcast %6 : vector<8x1xf32> to vector<8x256xf32>
    %8 = arith.mulf %5, %7 : vector<8x256xf32>
    %c0_6 = arith.constant 0 : index
    %c0_7 = arith.constant 0 : index
    %9 = vector.load %arg6[%c0_6, %c0_7] : memref<8x256xf32, #tpu.memory_space<vmem>>, vector<8x256xf32>
    %10 = arith.mulf %8, %8 : vector<8x256xf32>
    %11 = arith.addf %9, %10 : vector<8x256xf32>
    %c0_8 = arith.constant 0 : index
    %c0_9 = arith.constant 0 : index
    %12 = vector.load %arg6[%c0_8, %c0_9] : memref<8x256xf32, #tpu.memory_space<vmem>>, vector<8x256xf32>
    tpu.vector_store %arg6[%c0_8, %c0_9], %11 {strides = array<i32>} : memref<8x256xf32, #tpu.memory_space<vmem>>, vector<8x256xf32>,
    %c0_i32_10 = arith.constant 0 : i32
    %13 = arith.cmpi eq, %arg1, %c0_i32_10 : i32
    %14 = arith.extui %13 : i1 to i32
    %c0_i32_11 = arith.constant 0 : i32
    %15 = arith.cmpi ne, %14, %c0_i32_11 : i32
    scf.if %15 {
      %c0_12 = arith.constant 0 : index
      %c0_13 = arith.constant 0 : index
      %16 = vector.load %arg6[%c0_12, %c0_13] : memref<8x256xf32, #tpu.memory_space<vmem>>, vector<8x256xf32>
      %17 = vector.shape_cast %16 : vector<8x256xf32> to vector<1x8x256xf32>
      %cst = arith.constant dense<0.000000e+00> : vector<1xf32>
      %18 = vector.multi_reduction <add>, %17, %cst [1, 2] : vector<1x8x256xf32> to vector<1xf32>
      %19 = vector.shape_cast %18 : vector<1xf32> to vector<1x1x1xf32>
      %20 = vector.extract %19[0, 0, 0] : f32 from vector<1x1x1xf32>
      %21 = vector.broadcast %20 : f32 to vector<1x8x128xf32>
      %c0_14 = arith.constant 0 : index
      %c0_15 = arith.constant 0 : index
      %c0_16 = arith.constant 0 : index
      %22 = vector.load %arg5[%c0_14, %c0_15, %c0_16] : memref<1x8x128xf32, #tpu.memory_space<vmem>>, vector<1x8x128xf32>
      tpu.vector_store %arg5[%c0_14, %c0_15, %c0_16], %21 {strides = array<i32>} : memref<1x8x128xf32, #tpu.memory_space<vmem>>, vector<1x8x128xf32>,
    } else {
    }
    return
  }
  func.func @transform_0(%arg0: i32, %arg1: i32) -> (i32, i32) {
    %c0_i32 = arith.constant 0 : i32
    return %arg0, %arg1 : i32, i32
  }
  func.func @transform_1(%arg0: i32, %arg1: i32) -> (i32, i32) {
    %c0_i32 = arith.constant 0 : i32
    return %arg0, %arg1 : i32, i32
  }
  func.func @transform_2(%arg0: i32, %arg1: i32) -> (i32, i32) {
    %c0_i32 = arith.constant 0 : i32
    %c0_i32_0 = arith.constant 0 : i32
    return %arg0, %c0_i32 : i32, i32
  }
  func.func @transform_3(%arg0: i32, %arg1: i32) -> (i32, i32, i32) {
    %c0_i32 = arith.constant 0 : i32
    %c0_i32_0 = arith.constant 0 : i32
    %c0_i32_1 = arith.constant 0 : i32
    return %arg0, %c0_i32, %c0_i32_0 : i32, i32, i32
  }
}

</mosaic_0001>

<llo_original>
// kernel: tpu_custom_call.1
$region0: #{tpu_custom_call.1}
  #allocation0 [shape = 'u32[]', space=smem, size = 0x4, offset = 0x4, fixed_abs, tag = 'smem constant byte address 0x4 - core index']
  #allocation1 [shape = 'u32[144,128]{1,0:T(1,128)}', space=vmem, size = 0x12000, scoped, tag = 'internal scratch']
  #allocation2 [shape = 'f32[8,256]{1,0:T(8,128)}', space=vmem, size = 0x2000, scoped, tag = 'scratch operand']
  %s0 = inlined_call_operand.hbm [shape: f32[8,256], index: 0, kind: input, shape index: {}]
  %s1 = inlined_call_operand.hbm [shape: f32[8,256], index: 1, kind: input, shape index: {}]
  %s2 = inlined_call_operand.vmem [shape: f32[8,1], index: 2, kind: input, shape index: {}]
  %s3 = inlined_call_operand.hbm [shape: f32[1,8,128], index: 3, kind: output, shape index: {}]
  %s4 = sld [smem:[#allocation0]]
  $region38: #{tpu_custom_call.1} parent=0
    _
  %s6 = ssub.s32 1, %s4
  %s7 = scalar_select 0, %s6, %s4
  $region1: #{tpu_custom_call.1} parent=0
    #allocation3 [shape = 'u8[8192]{0}', space=vmem, size = 0x2000, scoped, tag = 'input window, operand 0, single buffered']
    #allocation4 [shape = 's32[1]{0}', space=sflag, size = 0x4, scoped, tag = 'scoped memory for tpu_custom_call.1']
    #allocation5 [shape = 's32[1]{0}', space=sflag, size = 0x4, scoped, tag = 'scoped memory for tpu_custom_call.1']
    #allocation6 [shape = 'u8[8192]{0}', space=vmem, size = 0x2000, scoped, tag = 'input window, operand 1, single buffered']
    #allocation7 [shape = 's32[1]{0}', space=sflag, size = 0x4, scoped, tag = 'scoped memory for tpu_custom_call.1']
    #allocation8 [shape = 'u8[4096]{0}', space=vmem, size = 0x1000, scoped, tag = 'output window, operand 0, single buffered']
    %8 = vsyncpa [#allocation4], 0
    %9 = vsyncpa [#allocation7], 0
    %10 = vsyncpa [#allocation5], 0
    // Predicated region
    $region2: #{tpu_custom_call.1} parent=1 // pred_check
      _
    $region3: #{tpu_custom_call.1} parent=1 // pred_check_branch
      %12 = sbr.rel (0) target = $region5
    $region4: #{tpu_custom_call.1} parent=1 // pred_region
      %s14 = ssub.s32 256, 256
      %15 = vsyncadd [#allocation4], %s14
      %s17 = sshll.u32 [#allocation3], 4
      %s18 = int_to_ptr.vmem [resolvable:$true] %s17
      %20 = dma.hbm_to_vmem [thread:$0]  %s0, 256, %s18, [#allocation4]
    $region5: #{tpu_custom_call.1} parent=1 // pred_fallthru
      _
    // Predicated region
    $region6: #{tpu_custom_call.1} parent=1 // pred_check
      _
    $region7: #{tpu_custom_call.1} parent=1 // pred_check_branch
      %22 = sbr.rel (0) target = $region9
    $region8: #{tpu_custom_call.1} parent=1 // pred_region
      %s24 = ssub.s32 256, 256
      %25 = vsyncadd [#allocation7], %s24
      %s27 = sshll.u32 [#allocation6], 4
      %s28 = int_to_ptr.vmem [resolvable:$true] %s27
      %30 = dma.hbm_to_vmem [thread:$0]  %s1, 256, %s28, [#allocation7]
    $region9: #{tpu_custom_call.1} parent=1 // pred_fallthru
      _
    // Predicated region
    $region10: #{tpu_custom_call.1} parent=1 // pred_check
      _
    $region11: #{tpu_custom_call.1} parent=1 // pred_check_branch
      %32 = sbr.rel (0) target = $region13
    $region12: #{tpu_custom_call.1} parent=1 // pred_region
      _
    $region13: #{tpu_custom_call.1} parent=1 // pred_fallthru
      _
    // Predicated region
    $region14: #{tpu_custom_call.1} parent=1 // pred_check
      _
    $region15: #{tpu_custom_call.1} parent=1 // pred_check_branch
      %34 = sbr.rel (0) target = $region17
    $region16: #{tpu_custom_call.1} parent=1 // pred_region
      %35 = dma.done [#allocation4], 256
    $region17: #{tpu_custom_call.1} parent=1 // pred_fallthru
      _
    // Predicated region
    $region18: #{tpu_custom_call.1} parent=1 // pred_check
      _
    $region19: #{tpu_custom_call.1} parent=1 // pred_check_branch
      %37 = sbr.rel (0) target = $region21
    $region20: #{tpu_custom_call.1} parent=1 // pred_region
      %38 = dma.done [#allocation7], 256
    $region21: #{tpu_custom_call.1} parent=1 // pred_fallthru
      _
    %p39 = scmp.eq.s32.totalorder 0, 0
    // Predicated region
    $region22: #{tpu_custom_call.1} parent=1 // pred_check
      %p40 = pneg %p39
    $region23: #{tpu_custom_call.1} parent=1 // pred_check_branch
      %42 = sbr.rel (%p40) target = $region25
    $region24: #{tpu_custom_call.1} parent=1 // pred_region
      %43 = vst [vmem:[#allocation2] sm:$0xff] 0.0
      %44 = vst [vmem:[#allocation2 + $0x8] sm:$0xff] 0.0
    $region25: #{tpu_custom_call.1} parent=1 // pred_fallthru
      _
    %v45 = vld [vmem:[#allocation3] sm:$0xff]
    %v46 = vld [vmem:[#allocation3 + $0x8] sm:$0xff]
    %v47 = vld [vmem:[#allocation6] sm:$0xff]
    %v48 = vld [vmem:[#allocation6 + $0x8] sm:$0xff]
    %v49 = vsub.f32 %v45, %v47
    %v50 = vsub.f32 %v46, %v48
    %v51 = vld [vmem:[%s2] sm:$0xff]
    %53 = vset.pattern.permute.xlu0 0
    %54 = vperm.xlu0 %53, %v51
    %v55 = vpop.permute.xlu0 %54
    %v57 = vmul.f32 %v49, %v55
    %v58 = vmul.f32 %v50, %v55
    %v59 = vld [vmem:[#allocation2] sm:$0xff]
    %v60 = vld [vmem:[#allocation2 + $0x8] sm:$0xff]
    %v61 = vmul.f32 %v57, %v57
    %v62 = vmul.f32 %v58, %v58
    %v63 = vadd.f32 %v59, %v61
    %v64 = vadd.f32 %v60, %v62
    %65 = vst [vmem:[#allocation2] sm:$0xff] %v63
    %66 = vst [vmem:[#allocation2 + $0x8] sm:$0xff] %v64
    // Predicated region
    $region26: #{tpu_custom_call.1} parent=1 // pred_check
      %p67 = pneg %p39
    $region27: #{tpu_custom_call.1} parent=1 // pred_check_branch
      %69 = sbr.rel (%p67) target = $region29
    $region28: #{tpu_custom_call.1} parent=1 // pred_region
      %v70 = vld [vmem:[#allocation2] sm:$0xff]
      %v71 = vld [vmem:[#allocation2 + $0x8] sm:$0xff]
      %v72 = vadd.f32 %v70, %v71
      %73 = vadd.xlane.f32.xlu0 %v72
      %v74 = vpop.xlane.xlu0 %73
      %v75 = vrot.slane %v74, 4
      %v76 = vadd.f32 %v74, %v75
      %v77 = vrot.slane %v76, 2
      %v78 = vadd.f32 %v76, %v77
      %v79 = vrot.slane %v78, 1
      %v80 = vadd.f32 %v78, %v79
      %s81 = vtos %v80
      %v82 = vstv %s81
      %83 = vst [vmem:[#allocation8] sm:$0xff] %v82
    $region29: #{tpu_custom_call.1} parent=1 // pred_fallthru
      _
    // Predicated region
    $region30: #{tpu_custom_call.1} parent=1 // pred_check
      _
    $region31: #{tpu_custom_call.1} parent=1 // pred_check_branch
      %85 = sbr.rel (0) target = $region33
    $region32: #{tpu_custom_call.1} parent=1 // pred_region
      %s87 = ssub.s32 128, 128
      %88 = vsyncadd [#allocation5], %s87
      %s90 = sshll.u32 [#allocation8], 4
      %s91 = int_to_ptr.vmem [resolvable:$true] %s90
      %93 = dma.vmem_to_hbm [thread:$0]  %s91, 128, %s3, [#allocation5]
    $region33: #{tpu_custom_call.1} parent=1 // pred_fallthru
      _
    // Predicated region
    $region34: #{tpu_custom_call.1} parent=1 // pred_check
      _
    $region35: #{tpu_custom_call.1} parent=1 // pred_check_branch
      %95 = sbr.rel (0) target = $region37
    $region36: #{tpu_custom_call.1} parent=1 // pred_region
      %96 = dma.done [#allocation5], 128
    $region37: #{tpu_custom_call.1} parent=1 // pred_fallthru
      _
    %97 = vsyncpa [#allocation4], 1
    %98 = vsyncpa [#allocation7], 1
    %99 = vsyncpa [#allocation5], 1

</llo_original>
